<compile_context>
chip_gen: v5e
topology: v5e:2x2
jax: 0.10.0
libtpu: 0.0.40
codegen_flags: <defaults>
</compile_context>

<pallas_src>
import functools

import numpy as np

import jax
import jax.numpy as jnp
from jax.experimental import pallas as pl
from jax.experimental.pallas import tpu as pltpu


SEQ = 4                    # x.reshape(4, B, -1)
EMBED = 16                 # attention embed dim
HIDDEN = 64                # projection width
CHUNKS = HIDDEN // EMBED   # 4 tokens packed per projected row


def _fused_kernel(x_ref, w1_ref, b1_ref, g_ref, beta_ref,
                  wqkv_ref, bqkv_ref, rb_ref, weff_ref, beff_ref,
                  o_ref, *, eps):
    B = x_ref.shape[0]
    G = B // SEQ                              # packed rows per attention group

    # ---- projection: Linear -> BatchNorm1d (batch stats, biased var) -> ReLU ----
    h = jnp.dot(x_ref[...], w1_ref[...], preferred_element_type=jnp.float32) + b1_ref[...]
    mean = jnp.mean(h, axis=0, keepdims=True)
    var = jnp.mean((h - mean) ** 2, axis=0, keepdims=True)
    a = jnp.maximum(
        (h - mean) * jax.lax.rsqrt(var + eps) * g_ref[...] + beta_ref[...], 0.0)   # (B,64)

    # ---- fused QKV projection for the 4 tokens packed in each row ----
    # lanes [0,64) = Q (pre-scaled by 1/sqrt(dh)), [64,128) = K, [128,192) = V,
    # each lane-packed as 4 tokens x 16.
    # (For large B / out_dim on v6e/v7x, cast `a` and the weight refs to bf16 here while
    #  keeping preferred_element_type=f32; kept f32 for parity at tiny sizes / v5e.)
    qkv = jnp.dot(a, wqkv_ref[...], preferred_element_type=jnp.float32) + bqkv_ref[...]
    q = qkv[:, :HIDDEN]
    k = qkv[:, HIDDEN:2 * HIDDEN]
    v = qkv[:, 2 * HIDDEN:3 * HIDDEN]

    # ---- attention, fully lane-packed (no gather/scatter matmuls) ----
    # With B % 4 == 0, attention group l occupies packed rows [l*G,(l+1)*G).  Rotating
    # K/V by d*G rows aligns every query group with a distinct key/value group; since the
    # softmax sums over all 4 rotations, the rotation direction is immaterial as long as
    # K and V use the same rolls.
    k_rolls = [k] + [pltpu.roll(k, shift=d * G, axis=0) for d in range(1, SEQ)]
    v_rolls = [v] + [pltpu.roll(v, shift=d * G, axis=0) for d in range(1, SEQ)]

    # scores: ONE batched block-diag(ones(dh,dh)) matmul sums the dh score lanes per head
    # and broadcasts the sum back over those lanes.
    prod = jnp.concatenate([q * kr for kr in k_rolls], axis=0)           # (4B, 64), VPU
    s_all = jnp.dot(prod, rb_ref[...], preferred_element_type=jnp.float32)
    s = [s_all[d * B:(d + 1) * B, :] for d in range(SEQ)]

    # softmax over the 4 key groups (VPU/EUP only)
    m = jnp.maximum(jnp.maximum(s[0], s[1]), jnp.maximum(s[2], s[3]))
    e = [jnp.exp(s[d] - m) for d in range(SEQ)]
    denom = (e[0] + e[1]) + (e[2] + e[3])
    inv = pl.reciprocal(denom, approx=True)                               # EUP
    numer = ((e[0] * v_rolls[0] + e[1] * v_rolls[1])
             + (e[2] * v_rolls[2] + e[3] * v_rolls[3]))
    ctx = numer * inv          # (B,64) == attn_output.reshape(B,64): layout is identity

    # ---- out_proj folded into the predictor; single lane-dense (128-wide) store ----
    o_ref[...] = (jnp.dot(ctx, weff_ref[...], preferred_element_type=jnp.float32)
                  + beff_ref[...]).astype(o_ref.dtype)


# ---------------------------- wrapper ----------------------------

def _full_spec(shape):
    # whole-array block (block_shape == array shape satisfies the (8,128) rule)
    return pl.BlockSpec(shape, lambda *_: (0,) * len(shape))


def init_params(key, input_dim, output_dim, num_heads=4):
    ks = jax.random.split(key, 10)

    def r(k, shape, scale=0.1):
        return jax.random.normal(k, shape, jnp.float32) * scale

    return dict(
        w1=r(ks[0], (input_dim, HIDDEN)),          # Linear(input_dim, 64), stored (in, out)
        b1=r(ks[1], (1, HIDDEN)),
        gamma=1.0 + r(ks[2], (1, HIDDEN)),         # BatchNorm1d(64) affine
        beta=r(ks[3], (1, HIDDEN)),
        in_w=r(ks[4], (EMBED, 3 * EMBED)),         # MHA in_proj, stored (E, 3E)
        in_b=r(ks[5], (1, 3 * EMBED)),
        out_w=r(ks[6], (EMBED, EMBED)),            # MHA out_proj, stored (E, E)
        out_b=r(ks[7], (1, EMBED)),
        wp=r(ks[8], (HIDDEN, output_dim)),         # predictor Linear(64, out)
        bp=r(ks[9], (1, output_dim)),
    )


def joint_attn_forward(params, x, num_heads=4):
    B = x.shape[0]
    assert B % SEQ == 0, "lane-packed layout requires batch divisible by 4"
    # TODO(synk): general B % 4 != 0 batches would need an explicit token-gather path.
    out_dim = params["wp"].shape[1]
    out_pad = ((out_dim + 127) // 128) * 128        # 128-lane (unmasked) output store
    dh = EMBED // num_heads
    scale = 1.0 / float(dh) ** 0.5

    in_w, in_b = params["in_w"], params["in_b"]
    # fused QKV weights: 16-wide chunk j of a row -> Q lanes [16j,16j+16),
    # K lanes [64+16j, ...), V lanes [128+16j, ...); softmax scale folded into Q (w & b).
    wqkv = jnp.zeros((HIDDEN, 3 * HIDDEN), jnp.float32)
    bqkv = jnp.zeros((1, 3 * HIDDEN), jnp.float32)
    for j in range(CHUNKS):
        rows = slice(j * EMBED, (j + 1) * EMBED)
        for part, sc in ((0, scale), (1, 1.0), (2, 1.0)):
            cols = slice(part * HIDDEN + j * EMBED, part * HIDDEN + (j + 1) * EMBED)
            wqkv = wqkv.at[rows, cols].set(in_w[:, part * EMBED:(part + 1) * EMBED] * sc)
            bqkv = bqkv.at[:, cols].set(in_b[:, part * EMBED:(part + 1) * EMBED] * sc)

    # fold out_proj into the predictor (computed once at trace time), pad to out_pad lanes
    weff = jnp.zeros((HIDDEN, out_pad), jnp.float32)
    beff = jnp.zeros((1, out_pad), jnp.float32).at[:, :out_dim].set(params["bp"])
    for j in range(CHUNKS):
        wp_j = params["wp"][j * EMBED:(j + 1) * EMBED, :]
        weff = weff.at[j * EMBED:(j + 1) * EMBED, :out_dim].set(params["out_w"] @ wp_j)
        beff = beff.at[:, :out_dim].add(params["out_b"] @ wp_j)

    # per-(token-chunk, head) sum-and-broadcast matrix: block-diagonal ones(dh, dh)
    rb = jnp.asarray(np.kron(np.eye(HIDDEN // dh, dtype=np.float32),
                             np.ones((dh, dh), np.float32)))

    args = (x, params["w1"], params["b1"], params["gamma"], params["beta"],
            wqkv, bqkv, rb, weff, beff)

    # NOTE: at large B, tile B on a leading "parallel" grid axis (BN stats from a tiny
    # pre-pass) so v7x's second TensorCore gets work; at small B one grid step is optimal.
    out = pl.pallas_call(
        functools.partial(_fused_kernel, eps=1e-5),
        out_shape=jax.ShapeDtypeStruct((B, out_pad), jnp.float32),
        grid=(1,),
        in_specs=[_full_spec(a.shape) for a in args],
        out_specs=_full_spec((B, out_pad)),
        compiler_params=pltpu.CompilerParams(dimension_semantics=("arbitrary",)),
    )(*args)
    return out[:, :out_dim]


# ---------------------------- pure-JAX reference (self-check only) ----------------------------

def _reference_forward(params, x, num_heads=4):
    eps = 1e-5
    B = x.shape[0]
    L, E, H = SEQ, EMBED, num_heads
    Dh = E // H
    h = x @ params["w1"] + params["b1"]
    mean = h.mean(axis=0, keepdims=True)
    var = ((h - mean) ** 2).mean(axis=0, keepdims=True)
    a = jnp.maximum((h - mean) / jnp.sqrt(var + eps) * params["gamma"] + params["beta"], 0.0)
    xs = a.reshape(L, B, E)                                   # torch raw reshape
    qkv = xs.reshape(L * B, E) @ params["in_w"] + params["in_b"]
    q, k, v = jnp.split(qkv, 3, axis=-1)

    def heads(t):
        return t.reshape(L, B, H, Dh).transpose(1, 2, 0, 3)   # (B, H, L, Dh)

    qh, kh, vh = heads(q), heads(k), heads(v)
    s = jnp.einsum("bhqd,bhkd->bhqk", qh, kh) / (Dh ** 0.5)
    p = jax.nn.softmax(s, axis=-1)
    o = jnp.einsum("bhqk,bhkd->bhqd", p, vh)
    attn = o.transpose(2, 0, 1, 3).reshape(L * B, E) @ params["out_w"] + params["out_b"]
    attn_flat = attn.reshape(L, B, E).reshape(B, L * E)       # torch raw reshape
    return attn_flat @ params["wp"] + params["bp"]


if __name__ == "__main__":
    key = jax.random.PRNGKey(0)
    B, input_dim, output_dim = 8, 32, 8

    k_x, k_p = jax.random.split(key)
    x = jax.random.normal(k_x, (B, input_dim), jnp.float32)
    params = init_params(k_p, input_dim, output_dim, num_heads=4)

    out = jax.jit(joint_attn_forward)(params, x)
    jax.block_until_ready(out)

    assert out.shape == (B, output_dim), out.shape
    assert bool(jnp.all(jnp.isfinite(out)))

    with jax.default_matmul_precision("float32"):
        ref = _reference_forward(params, x)
    assert bool(jnp.allclose(out, ref, rtol=5e-2, atol=5e-2)), (
        float(jnp.max(jnp.abs(out - ref))))

    print("KERNEL_OK")
</pallas_src>

<mosaic_0001>
module attributes {stable_mosaic.version = 11 : i64} {
  func.func @_fused_kernel(%arg0: i32, %arg1: memref<8x32xf32, #tpu.memory_space<vmem>>, %arg2: memref<32x64xf32, #tpu.memory_space<vmem>>, %arg3: memref<1x64xf32, #tpu.memory_space<vmem>>, %arg4: memref<1x64xf32, #tpu.memory_space<vmem>>, %arg5: memref<1x64xf32, #tpu.memory_space<vmem>>, %arg6: memref<64x192xf32, #tpu.memory_space<vmem>>, %arg7: memref<1x192xf32, #tpu.memory_space<vmem>>, %arg8: memref<64x64xf32, #tpu.memory_space<vmem>>, %arg9: memref<64x128xf32, #tpu.memory_space<vmem>>, %arg10: memref<1x128xf32, #tpu.memory_space<vmem>>, %arg11: memref<8x128xf32, #tpu.memory_space<vmem>>) attributes {dimension_semantics = [#tpu.dimension_semantics<arbitrary>], iteration_bounds = array<i64: 1>, scalar_prefetch = 0 : i64, scratch_operands = 0 : i64, tpu.core_type = #tpu.core_type<tc>, window_params = [{pipeline_mode = #tpu.pipeline_mode<synchronous>, transform_indices = @transform_0, window_bounds = array<i64: 8, 32>}, {pipeline_mode = #tpu.pipeline_mode<synchronous>, transform_indices = @transform_1, window_bounds = array<i64: 32, 64>}, {pipeline_mode = #tpu.pipeline_mode<synchronous>, transform_indices = @transform_2, window_bounds = array<i64: 1, 64>}, {pipeline_mode = #tpu.pipeline_mode<synchronous>, transform_indices = @transform_3, window_bounds = array<i64: 1, 64>}, {pipeline_mode = #tpu.pipeline_mode<synchronous>, transform_indices = @transform_4, window_bounds = array<i64: 1, 64>}, {pipeline_mode = #tpu.pipeline_mode<synchronous>, transform_indices = @transform_5, window_bounds = array<i64: 64, 192>}, {pipeline_mode = #tpu.pipeline_mode<synchronous>, transform_indices = @transform_6, window_bounds = array<i64: 1, 192>}, {pipeline_mode = #tpu.pipeline_mode<synchronous>, transform_indices = @transform_7, window_bounds = array<i64: 64, 64>}, {pipeline_mode = #tpu.pipeline_mode<synchronous>, transform_indices = @transform_8, window_bounds = array<i64: 64, 128>}, {pipeline_mode = #tpu.pipeline_mode<synchronous>, transform_indices = @transform_9, window_bounds = array<i64: 1, 128>}, {pipeline_mode = #tpu.pipeline_mode<synchronous>, transform_indices = @transform_10, window_bounds = array<i64: 8, 128>}]} {
    %c0 = arith.constant 0 : index
    %c0_0 = arith.constant 0 : index
    %0 = vector.load %arg1[%c0, %c0_0] : memref<8x32xf32, #tpu.memory_space<vmem>>, vector<8x32xf32>
    %c0_1 = arith.constant 0 : index
    %c0_2 = arith.constant 0 : index
    %1 = vector.load %arg2[%c0_1, %c0_2] : memref<32x64xf32, #tpu.memory_space<vmem>>, vector<32x64xf32>
    %cst = arith.constant dense<0.000000e+00> : vector<8x64xf32>
    %2 = tpu.matmul %0, %1, %cst {dimension_numbers = #tpu.dot_dimension_numbers<[1], [0], [0], [1], [0, 0, 1, 1], [], []>} : vector<8x32xf32>, vector<32x64xf32>, vector<8x64xf32> -> vector<8x64xf32>
    %c0_3 = arith.constant 0 : index
    %c0_4 = arith.constant 0 : index
    %3 = vector.load %arg3[%c0_3, %c0_4] : memref<1x64xf32, #tpu.memory_space<vmem>>, vector<1x64xf32>
    %4 = vector.broadcast %3 : vector<1x64xf32> to vector<8x64xf32>
    %5 = arith.addf %2, %4 : vector<8x64xf32>
    %cst_5 = arith.constant dense<0.000000e+00> : vector<64xf32>
    %6 = vector.multi_reduction <add>, %5, %cst_5 [0] : vector<8x64xf32> to vector<64xf32>
    %7 = vector.shape_cast %6 : vector<64xf32> to vector<1x64xf32>
    %cst_6 = arith.constant 8.000000e+00 : f32
    %8 = vector.broadcast %cst_6 : f32 to vector<1x64xf32>
    %9 = arith.divf %7, %8 : vector<1x64xf32>
    %10 = vector.broadcast %9 : vector<1x64xf32> to vector<8x64xf32>
    %11 = arith.subf %5, %10 : vector<8x64xf32>
    %12 = arith.mulf %11, %11 : vector<8x64xf32>
    %cst_7 = arith.constant dense<0.000000e+00> : vector<64xf32>
    %13 = vector.multi_reduction <add>, %12, %cst_7 [0] : vector<8x64xf32> to vector<64xf32>
    %14 = vector.shape_cast %13 : vector<64xf32> to vector<1x64xf32>
    %cst_8 = arith.constant 8.000000e+00 : f32
    %15 = vector.broadcast %cst_8 : f32 to vector<1x64xf32>
    %16 = arith.divf %14, %15 : vector<1x64xf32>
    %17 = vector.broadcast %9 : vector<1x64xf32> to vector<8x64xf32>
    %18 = arith.subf %5, %17 : vector<8x64xf32>
    %cst_9 = arith.constant 9.99999974E-6 : f32
    %19 = vector.broadcast %cst_9 : f32 to vector<1x64xf32>
    %20 = arith.addf %16, %19 : vector<1x64xf32>
    %21 = math.rsqrt %20 : vector<1x64xf32>
    %22 = vector.broadcast %21 : vector<1x64xf32> to vector<8x64xf32>
    %23 = arith.mulf %18, %22 : vector<8x64xf32>
    %c0_10 = arith.constant 0 : index
    %c0_11 = arith.constant 0 : index
    %24 = vector.load %arg4[%c0_10, %c0_11] : memref<1x64xf32, #tpu.memory_space<vmem>>, vector<1x64xf32>
    %25 = vector.broadcast %24 : vector<1x64xf32> to vector<8x64xf32>
    %26 = arith.mulf %23, %25 : vector<8x64xf32>
    %c0_12 = arith.constant 0 : index
    %c0_13 = arith.constant 0 : index
    %27 = vector.load %arg5[%c0_12, %c0_13] : memref<1x64xf32, #tpu.memory_space<vmem>>, vector<1x64xf32>
    %28 = vector.broadcast %27 : vector<1x64xf32> to vector<8x64xf32>
    %29 = arith.addf %26, %28 : vector<8x64xf32>
    %cst_14 = arith.constant 0.000000e+00 : f32
    %30 = vector.broadcast %cst_14 : f32 to vector<8x64xf32>
    %31 = arith.maximumf %29, %30 : vector<8x64xf32>
    %c0_15 = arith.constant 0 : index
    %c0_16 = arith.constant 0 : index
    %32 = vector.load %arg6[%c0_15, %c0_16] : memref<64x192xf32, #tpu.memory_space<vmem>>, vector<64x192xf32>
    %cst_17 = arith.constant dense<0.000000e+00> : vector<8x192xf32>
    %33 = tpu.matmul %31, %32, %cst_17 {dimension_numbers = #tpu.dot_dimension_numbers<[1], [0], [0], [1], [0, 0, 1, 1], [], []>} : vector<8x64xf32>, vector<64x192xf32>, vector<8x192xf32> -> vector<8x192xf32>
    %c0_18 = arith.constant 0 : index
    %c0_19 = arith.constant 0 : index
    %34 = vector.load %arg7[%c0_18, %c0_19] : memref<1x192xf32, #tpu.memory_space<vmem>>, vector<1x192xf32>
    %35 = vector.broadcast %34 : vector<1x192xf32> to vector<8x192xf32>
    %36 = arith.addf %33, %35 : vector<8x192xf32>
    %37 = vector.extract_strided_slice %36 {offsets = [0, 0], sizes = [8, 64], strides = [1, 1]} : vector<8x192xf32> to vector<8x64xf32>
    %38 = vector.extract_strided_slice %36 {offsets = [0, 64], sizes = [8, 64], strides = [1, 1]} : vector<8x192xf32> to vector<8x64xf32>
    %39 = vector.extract_strided_slice %36 {offsets = [0, 128], sizes = [8, 64], strides = [1, 1]} : vector<8x192xf32> to vector<8x64xf32>
    %c2_i32 = arith.constant 2 : i32
    %40 = tpu.dynamic_rotate %38 by %c2_i32 dim 0 : vector<8x64xf32>, i32 -> vector<8x64xf32>
    %c4_i32 = arith.constant 4 : i32
    %41 = tpu.dynamic_rotate %38 by %c4_i32 dim 0 : vector<8x64xf32>, i32 -> vector<8x64xf32>
    %c6_i32 = arith.constant 6 : i32
    %42 = tpu.dynamic_rotate %38 by %c6_i32 dim 0 : vector<8x64xf32>, i32 -> vector<8x64xf32>
    %c2_i32_20 = arith.constant 2 : i32
    %43 = tpu.dynamic_rotate %39 by %c2_i32_20 dim 0 : vector<8x64xf32>, i32 -> vector<8x64xf32>
    %c4_i32_21 = arith.constant 4 : i32
    %44 = tpu.dynamic_rotate %39 by %c4_i32_21 dim 0 : vector<8x64xf32>, i32 -> vector<8x64xf32>
    %c6_i32_22 = arith.constant 6 : i32
    %45 = tpu.dynamic_rotate %39 by %c6_i32_22 dim 0 : vector<8x64xf32>, i32 -> vector<8x64xf32>
    %46 = arith.mulf %37, %38 : vector<8x64xf32>
    %47 = arith.mulf %37, %40 : vector<8x64xf32>
    %48 = arith.mulf %37, %41 : vector<8x64xf32>
    %49 = arith.mulf %37, %42 : vector<8x64xf32>
    %50 = tpu.concatenate %46, %47, %48, %49 in 0 : vector<8x64xf32>, vector<8x64xf32>, vector<8x64xf32>, vector<8x64xf32> -> vector<32x64xf32>
    %c0_23 = arith.constant 0 : index
    %c0_24 = arith.constant 0 : index
    %51 = vector.load %arg8[%c0_23, %c0_24] : memref<64x64xf32, #tpu.memory_space<vmem>>, vector<64x64xf32>
    %cst_25 = arith.constant dense<0.000000e+00> : vector<32x64xf32>
    %52 = tpu.matmul %50, %51, %cst_25 {dimension_numbers = #tpu.dot_dimension_numbers<[1], [0], [0], [1], [0, 0, 1, 1], [], []>} : vector<32x64xf32>, vector<64x64xf32>, vector<32x64xf32> -> vector<32x64xf32>
    %53 = vector.extract_strided_slice %52 {offsets = [0, 0], sizes = [8, 64], strides = [1, 1]} : vector<32x64xf32> to vector<8x64xf32>
    %54 = vector.extract_strided_slice %52 {offsets = [8, 0], sizes = [8, 64], strides = [1, 1]} : vector<32x64xf32> to vector<8x64xf32>
    %55 = vector.extract_strided_slice %52 {offsets = [16, 0], sizes = [8, 64], strides = [1, 1]} : vector<32x64xf32> to vector<8x64xf32>
    %56 = vector.extract_strided_slice %52 {offsets = [24, 0], sizes = [8, 64], strides = [1, 1]} : vector<32x64xf32> to vector<8x64xf32>
    %57 = arith.maximumf %53, %54 : vector<8x64xf32>
    %58 = arith.maximumf %55, %56 : vector<8x64xf32>
    %59 = arith.maximumf %57, %58 : vector<8x64xf32>
    %60 = arith.subf %53, %59 : vector<8x64xf32>
    %61 = math.exp %60 : vector<8x64xf32>
    %62 = arith.subf %54, %59 : vector<8x64xf32>
    %63 = math.exp %62 : vector<8x64xf32>
    %64 = arith.subf %55, %59 : vector<8x64xf32>
    %65 = math.exp %64 : vector<8x64xf32>
    %66 = arith.subf %56, %59 : vector<8x64xf32>
    %67 = math.exp %66 : vector<8x64xf32>
    %68 = arith.addf %61, %63 : vector<8x64xf32>
    %69 = arith.addf %65, %67 : vector<8x64xf32>
    %70 = arith.addf %68, %69 : vector<8x64xf32>
    %71 = tpu.reciprocal %70 {approx = true} : vector<8x64xf32> -> vector<8x64xf32>
    %72 = arith.mulf %61, %39 : vector<8x64xf32>
    %73 = arith.mulf %63, %43 : vector<8x64xf32>
    %74 = arith.addf %72, %73 : vector<8x64xf32>
    %75 = arith.mulf %65, %44 : vector<8x64xf32>
    %76 = arith.mulf %67, %45 : vector<8x64xf32>
    %77 = arith.addf %75, %76 : vector<8x64xf32>
    %78 = arith.addf %74, %77 : vector<8x64xf32>
    %79 = arith.mulf %78, %71 : vector<8x64xf32>
    %c0_26 = arith.constant 0 : index
    %c0_27 = arith.constant 0 : index
    %80 = vector.load %arg9[%c0_26, %c0_27] : memref<64x128xf32, #tpu.memory_space<vmem>>, vector<64x128xf32>
    %cst_28 = arith.constant dense<0.000000e+00> : vector<8x128xf32>
    %81 = tpu.matmul %79, %80, %cst_28 {dimension_numbers = #tpu.dot_dimension_numbers<[1], [0], [0], [1], [0, 0, 1, 1], [], []>} : vector<8x64xf32>, vector<64x128xf32>, vector<8x128xf32> -> vector<8x128xf32>
    %c0_29 = arith.constant 0 : index
    %c0_30 = arith.constant 0 : index
    %82 = vector.load %arg10[%c0_29, %c0_30] : memref<1x128xf32, #tpu.memory_space<vmem>>, vector<1x128xf32>
    %83 = vector.broadcast %82 : vector<1x128xf32> to vector<8x128xf32>
    %84 = arith.addf %81, %83 : vector<8x128xf32>
    %c0_31 = arith.constant 0 : index
    %c0_32 = arith.constant 0 : index
    %85 = vector.load %arg11[%c0_31, %c0_32] : memref<8x128xf32, #tpu.memory_space<vmem>>, vector<8x128xf32>
    tpu.vector_store %arg11[%c0_31, %c0_32], %84 {strides = array<i32>} : memref<8x128xf32, #tpu.memory_space<vmem>>, vector<8x128xf32>,
    return
  }
  func.func @transform_0(%arg0: i32) -> (i32, i32) {
    %c0_i32 = arith.constant 0 : i32
    %c0_i32_0 = arith.constant 0 : i32
    %c0_i32_1 = arith.constant 0 : i32
    return %c0_i32, %c0_i32_0 : i32, i32
  }
  func.func @transform_1(%arg0: i32) -> (i32, i32) {
    %c0_i32 = arith.constant 0 : i32
    %c0_i32_0 = arith.constant 0 : i32
    %c0_i32_1 = arith.constant 0 : i32
    return %c0_i32, %c0_i32_0 : i32, i32
  }
  func.func @transform_2(%arg0: i32) -> (i32, i32) {
    %c0_i32 = arith.constant 0 : i32
    %c0_i32_0 = arith.constant 0 : i32
    %c0_i32_1 = arith.constant 0 : i32
    return %c0_i32, %c0_i32_0 : i32, i32
  }
  func.func @transform_3(%arg0: i32) -> (i32, i32) {
    %c0_i32 = arith.constant 0 : i32
    %c0_i32_0 = arith.constant 0 : i32
    %c0_i32_1 = arith.constant 0 : i32
    return %c0_i32, %c0_i32_0 : i32, i32
  }
  func.func @transform_4(%arg0: i32) -> (i32, i32) {
    %c0_i32 = arith.constant 0 : i32
    %c0_i32_0 = arith.constant 0 : i32
    %c0_i32_1 = arith.constant 0 : i32
    return %c0_i32, %c0_i32_0 : i32, i32
  }
  func.func @transform_5(%arg0: i32) -> (i32, i32) {
    %c0_i32 = arith.constant 0 : i32
    %c0_i32_0 = arith.constant 0 : i32
    %c0_i32_1 = arith.constant 0 : i32
    return %c0_i32, %c0_i32_0 : i32, i32
  }
  func.func @transform_6(%arg0: i32) -> (i32, i32) {
    %c0_i32 = arith.constant 0 : i32
    %c0_i32_0 = arith.constant 0 : i32
    %c0_i32_1 = arith.constant 0 : i32
    return %c0_i32, %c0_i32_0 : i32, i32
  }
  func.func @transform_7(%arg0: i32) -> (i32, i32) {
    %c0_i32 = arith.constant 0 : i32
    %c0_i32_0 = arith.constant 0 : i32
    %c0_i32_1 = arith.constant 0 : i32
    return %c0_i32, %c0_i32_0 : i32, i32
  }
  func.func @transform_8(%arg0: i32) -> (i32, i32) {
    %c0_i32 = arith.constant 0 : i32
    %c0_i32_0 = arith.constant 0 : i32
    %c0_i32_1 = arith.constant 0 : i32
    return %c0_i32, %c0_i32_0 : i32, i32
  }
  func.func @transform_9(%arg0: i32) -> (i32, i32) {
    %c0_i32 = arith.constant 0 : i32
    %c0_i32_0 = arith.constant 0 : i32
    %c0_i32_1 = arith.constant 0 : i32
    return %c0_i32, %c0_i32_0 : i32, i32
  }
  func.func @transform_10(%arg0: i32) -> (i32, i32) {
    %c0_i32 = arith.constant 0 : i32
    %c0_i32_0 = arith.constant 0 : i32
    %c0_i32_1 = arith.constant 0 : i32
    return %c0_i32, %c0_i32_0 : i32, i32
  }
}

</mosaic_0001>

<llo_original>
// kernel: joint_attn_forward.1
$region0: #{joint_attn_forward.1}
  #allocation0 [shape = 'u32[]', space=smem, size = 0x4, offset = 0x4, fixed_abs, tag = 'smem constant byte address 0x4 - core index']
  #allocation1 [shape = 'u32[72,128]{1,0:T(1,128)}', space=vmem, size = 0x9000, scoped, tag = 'internal scratch']
  %s0 = inlined_call_operand.vmem [shape: f32[8,32], index: 0, kind: input, shape index: {}]
  %s1 = inlined_call_operand.vmem [shape: f32[32,64], index: 1, kind: input, shape index: {}]
  %s2 = inlined_call_operand.vmem [shape: f32[1,64], index: 2, kind: input, shape index: {}]
  %s3 = inlined_call_operand.vmem [shape: f32[1,64], index: 3, kind: input, shape index: {}]
  %s4 = inlined_call_operand.vmem [shape: f32[1,64], index: 4, kind: input, shape index: {}]
  %s5 = inlined_call_operand.vmem [shape: f32[64,192], index: 5, kind: input, shape index: {}]
  %s6 = inlined_call_operand.vmem [shape: f32[1,192], index: 6, kind: input, shape index: {}]
  %s7 = inlined_call_operand.vmem [shape: f32[64,64], index: 7, kind: input, shape index: {}]
  %s8 = inlined_call_operand.vmem [shape: f32[64,128], index: 8, kind: input, shape index: {}]
  %s9 = inlined_call_operand.vmem [shape: f32[1,128], index: 9, kind: input, shape index: {}]
  %s10 = inlined_call_operand.hbm [shape: f32[8,128], index: 10, kind: output, shape index: {}]
  %s11 = sld [smem:[#allocation0]]
  $region50: #{joint_attn_forward.1} parent=0
    _
  %s13 = ssub.s32 1, %s11
  %s14 = scalar_select 0, %s13, %s11
  $region1: #{joint_attn_forward.1} parent=0
    #allocation2 [shape = 'u8[4096]{0}', space=vmem, size = 0x1000, scoped, tag = 'output window, operand 0, single buffered']
    #allocation3 [shape = 's32[1]{0}', space=sflag, size = 0x4, scoped, tag = 'scoped memory for joint_attn_forward.1']
    %15 = vsyncpa [#allocation3], 0
    // Predicated region
    $region2: #{joint_attn_forward.1} parent=1 // pred_check
      _
    $region3: #{joint_attn_forward.1} parent=1 // pred_check_branch
      %17 = sbr.rel (0) target = $region5
    $region4: #{joint_attn_forward.1} parent=1 // pred_region
      _
    $region5: #{joint_attn_forward.1} parent=1 // pred_fallthru
      _
    // Predicated region
    $region6: #{joint_attn_forward.1} parent=1 // pred_check
      _
    $region7: #{joint_attn_forward.1} parent=1 // pred_check_branch
      %19 = sbr.rel (0) target = $region9
    $region8: #{joint_attn_forward.1} parent=1 // pred_region
      _
    $region9: #{joint_attn_forward.1} parent=1 // pred_fallthru
      _
    // Predicated region
    $region10: #{joint_attn_forward.1} parent=1 // pred_check
      _
    $region11: #{joint_attn_forward.1} parent=1 // pred_check_branch
      %21 = sbr.rel (0) target = $region13
    $region12: #{joint_attn_forward.1} parent=1 // pred_region
      _
    $region13: #{joint_attn_forward.1} parent=1 // pred_fallthru
      _
    // Predicated region
    $region14: #{joint_attn_forward.1} parent=1 // pred_check
      _
    $region15: #{joint_attn_forward.1} parent=1 // pred_check_branch
      %23 = sbr.rel (0) target = $region17
    $region16: #{joint_attn_forward.1} parent=1 // pred_region
      _
    $region17: #{joint_attn_forward.1} parent=1 // pred_fallthru
      _
    // Predicated region
    $region18: #{joint_attn_forward.1} parent=1 // pred_check
      _
    $region19: #{joint_attn_forward.1} parent=1 // pred_check_branch
      %25 = sbr.rel (0) target = $region21
    $region20: #{joint_attn_forward.1} parent=1 // pred_region
      _
    $region21: #{joint_attn_forward.1} parent=1 // pred_fallthru
      _
    // Predicated region
    $region22: #{joint_attn_forward.1} parent=1 // pred_check
      _
    $region23: #{joint_attn_forward.1} parent=1 // pred_check_branch
      %27 = sbr.rel (0) target = $region25
    $region24: #{joint_attn_forward.1} parent=1 // pred_region
      _
    $region25: #{joint_attn_forward.1} parent=1 // pred_fallthru
      _
    // Predicated region
    $region26: #{joint_attn_forward.1} parent=1 // pred_check
      _
    $region27: #{joint_attn_forward.1} parent=1 // pred_check_branch
      %29 = sbr.rel (0) target = $region29
    $region28: #{joint_attn_forward.1} parent=1 // pred_region
      _
    $region29: #{joint_attn_forward.1} parent=1 // pred_fallthru
      _
    // Predicated region
    $region30: #{joint_attn_forward.1} parent=1 // pred_check
      _
    $region31: #{joint_attn_forward.1} parent=1 // pred_check_branch
      %31 = sbr.rel (0) target = $region33
    $region32: #{joint_attn_forward.1} parent=1 // pred_region
      _
    $region33: #{joint_attn_forward.1} parent=1 // pred_fallthru
      _
    // Predicated region
    $region34: #{joint_attn_forward.1} parent=1 // pred_check
      _
    $region35: #{joint_attn_forward.1} parent=1 // pred_check_branch
      %33 = sbr.rel (0) target = $region37
    $region36: #{joint_attn_forward.1} parent=1 // pred_region
      _
    $region37: #{joint_attn_forward.1} parent=1 // pred_fallthru
      _
    // Predicated region
    $region38: #{joint_attn_forward.1} parent=1 // pred_check
      _
    $region39: #{joint_attn_forward.1} parent=1 // pred_check_branch
      %35 = sbr.rel (0) target = $region41
    $region40: #{joint_attn_forward.1} parent=1 // pred_region
      _
    $region41: #{joint_attn_forward.1} parent=1 // pred_fallthru
      _
    %v36 = vld [vmem:[%s0] sm:$0xff]
    %v37 = vld [vmem:[%s1] sm:$0xff]
    %v38 = vld [vmem:[%s1 + $0x8] sm:$0xff]
    %v39 = vld [vmem:[%s1 + $0x10] sm:$0xff]
    %v40 = vld [vmem:[%s1 + $0x18] sm:$0xff]
    %v41 = vld [vmem:[%s2] sm:$0x1]
    %v43 = vperm.slane %v41, 0
    %vm45 = vcmask 261120
    %v47 = vsel %vm45, %v36, 0
    %49 = vmatpush.msra.mxu0 0.0
    %50 = vmatpush.msra.mxu0 0.0
    %51 = vmatpush.msra.mxu0 0.0
    %52 = vmatpush.msra.mxu0 0.0
    %53 = vmatpush.msra.mxu0 0.0
    %54 = vmatpush.msra.mxu0 0.0
    %55 = vmatpush.msra.mxu0 0.0
    %56 = vmatpush.msra.mxu0 0.0
    %57 = vmatpush.msra.mxu0 0.0
    %58 = vmatpush.msra.mxu0 0.0
    %59 = vmatpush.msra.mxu0 0.0
    %60 = vmatpush.msra.mxu0 0.0
    %61 = vmatpush.msra.mxu0 %v40
    %62 = vmatpush.msra.mxu0 %v39
    %63 = vmatpush.msra.mxu0 %v38
    %64 = vmatpush.msra.mxu0 %v37
    %65 = vmatmul.f32.gmra.mxu0 %v47
    %v66 = vpop.f32.mrf.mxu0
    %v67 = vadd.f32 %v43, %v66
    %68 = vdwg.mxu0
    %vm69 = vcmask 523264
    %v70 = vsel %vm69, %v67, 0.0
    %v71 = vrot.slane %v70, 4
    %v72 = vadd.f32 %v70, %v71
    %v73 = vrot.slane %v72, 2
    %v74 = vadd.f32 %v72, %v73
    %v75 = vrot.slane %v74, 1
    %v76 = vadd.f32 %v74, %v75
    %v77 = vrcp.pop 8.0
    %v78 = vmul.f32 8.0, %v77
    %v79 = vsub.f32 1.0, %v78
    %v80 = vmul.f32 %v77, %v79
    %v81 = vadd.f32 %v77, %v80
    %vm82 = vweird.f32 %v77
    %v83 = vsel %vm82, %v77, %v81
    %v84 = vmul.f32 %v76, %v83
    %v85 = vsub.f32 %v67, %v84
    %v86 = vmul.f32 %v85, %v85
    %v87 = vsel %vm69, %v86, 0.0
    %v88 = vrot.slane %v87, 4
    %v89 = vadd.f32 %v87, %v88
    %v90 = vrot.slane %v89, 2
    %v91 = vadd.f32 %v89, %v90
    %v92 = vrot.slane %v91, 1
    %v93 = vadd.f32 %v91, %v92
    %v94 = vmul.f32 %v93, %v83
    %v95 = vadd.f32 %v94, 1e-05
    %v96 = vrsqrt.pop %v95
    %v97 = vmul.f32 %v96, %v95
    %v98 = vmul.f32 %v97, %v96
    %v99 = vmul.f32 0.5, %v98
    %v100 = vsub.f32 1.5, %v99
    %v101 = vmul.f32 %v96, %v100
    %vm102 = vweird.f32 %v95
    %vm103 = vweird.f32 %v96
    %vm104 = vmor %vm102, %vm103
    %v105 = vsel %vm104, %v96, %v101
    %v106 = vmul.f32 %v85, %v105
    %v107 = vld [vmem:[%s3] sm:$0x1]
    %v109 = vperm.slane %v107, 0
    %v111 = vmul.f32 %v106, %v109
    %v112 = vld [vmem:[%s4] sm:$0x1]
    %v114 = vperm.slane %v112, 0
    %v116 = vadd.f32 %v111, %v114
    %v117 = vmax.f32 %v116, 0.0
    %v118 = vld [vmem:[%s5] sm:$0xff]
    %v119 = vld [vmem:[%s5 + $0x8] sm:$0xff]
    %v120 = vld [vmem:[%s5 + $0x10] sm:$0xff]
    %v121 = vld [vmem:[%s5 + $0x18] sm:$0xff]
    %v122 = vld [vmem:[%s5 + $0x20] sm:$0xff]
    %v123 = vld [vmem:[%s5 + $0x28] sm:$0xff]
    %v124 = vld [vmem:[%s5 + $0x30] sm:$0xff]
    %v125 = vld [vmem:[%s5 + $0x38] sm:$0xff]
    %v126 = vld [vmem:[%s5 + $0x40] sm:$0xff]
    %v127 = vld [vmem:[%s5 + $0x48] sm:$0xff]
    %v128 = vld [vmem:[%s5 + $0x50] sm:$0xff]
    %v129 = vld [vmem:[%s5 + $0x58] sm:$0xff]
    %v130 = vld [vmem:[%s5 + $0x60] sm:$0xff]
    %v131 = vld [vmem:[%s5 + $0x68] sm:$0xff]
    %v132 = vld [vmem:[%s5 + $0x70] sm:$0xff]
    %v133 = vld [vmem:[%s5 + $0x78] sm:$0xff]
    %v134 = vld [vmem:[%s6] sm:$0x3]
    %v136 = vperm.slane %v134, 0
    %v137 = vperm.slane %v134, 1
    %v141 = vsel %vm69, %v117, 0
    %143 = vmatpush.msra.mxu0 0.0
    %144 = vmatpush.msra.mxu0 0.0
    %145 = vmatpush.msra.mxu0 0.0
    %146 = vmatpush.msra.mxu0 0.0
    %147 = vmatpush.msra.mxu0 0.0
    %148 = vmatpush.msra.mxu0 0.0
    %149 = vmatpush.msra.mxu0 0.0
    %150 = vmatpush.msra.mxu0 0.0
    %151 = vmatpush.msra.mxu0 %v132
    %152 = vmatpush.msra.mxu0 %v130
    %153 = vmatpush.msra.mxu0 %v128
    %154 = vmatpush.msra.mxu0 %v126
    %155 = vmatpush.msra.mxu0 %v124
    %156 = vmatpush.msra.mxu0 %v122
    %157 = vmatpush.msra.mxu0 %v120
    %158 = vmatpush.msra.mxu0 %v118
    %159 = vmatmul.f32.gmra.mxu0 %v141
    %v160 = vpop.f32.mrf.mxu0
    %v161 = vadd.f32 %v136, %v160
    %162 = vdwg.mxu0
    %163 = vmatpush.msra.mxu0 0.0
    %164 = vmatpush.msra.mxu0 0.0
    %165 = vmatpush.msra.mxu0 0.0
    %166 = vmatpush.msra.mxu0 0.0
    %167 = vmatpush.msra.mxu0 0.0
    %168 = vmatpush.msra.mxu0 0.0
    %169 = vmatpush.msra.mxu0 0.0
    %170 = vmatpush.msra.mxu0 0.0
    %171 = vmatpush.msra.mxu0 %v133
    %172 = vmatpush.msra.mxu0 %v131
    %173 = vmatpush.msra.mxu0 %v129
    %174 = vmatpush.msra.mxu0 %v127
    %175 = vmatpush.msra.mxu0 %v125
    %176 = vmatpush.msra.mxu0 %v123
    %177 = vmatpush.msra.mxu0 %v121
    %178 = vmatpush.msra.mxu0 %v119
    %179 = vmatmul.f32.gmra.mxu0 %v141
    %v180 = vpop.f32.mrf.mxu0
    %v181 = vadd.f32 %v137, %v180
    %182 = vdwg.mxu0
    %184 = vrot.lane.b32.xlu0 %v161, 64
    %v185 = vpop.permute.xlu0 %184
    %v187 = vrot.slane %v185, 6
    %v188 = vrot.slane %v185, 4
    %v189 = vrot.slane %v185, 2
    %v190 = vrot.slane %v181, 6
    %v191 = vrot.slane %v181, 4
    %v192 = vrot.slane %v181, 2
    %v193 = vmul.f32 %v161, %v185
    %v194 = vmul.f32 %v161, %v187
    %v195 = vmul.f32 %v161, %v188
    %v196 = vmul.f32 %v161, %v189
    %v197 = vld [vmem:[%s7] sm:$0xff]
    %v198 = vld [vmem:[%s7 + $0x8] sm:$0xff]
    %v199 = vld [vmem:[%s7 + $0x10] sm:$0xff]
    %v200 = vld [vmem:[%s7 + $0x18] sm:$0xff]
    %v201 = vld [vmem:[%s7 + $0x20] sm:$0xff]
    %v202 = vld [vmem:[%s7 + $0x28] sm:$0xff]
    %v203 = vld [vmem:[%s7 + $0x30] sm:$0xff]
    %v204 = vld [vmem:[%s7 + $0x38] sm:$0xff]
    %v206 = vsel %vm69, %v193, 0
    %v209 = vsel %vm69, %v194, 0
    %v212 = vsel %vm69, %v195, 0
    %v215 = vsel %vm69, %v196, 0
    %217 = vmatpush.msra.mxu0 0.0
    %218 = vmatpush.msra.mxu0 0.0
    %219 = vmatpush.msra.mxu0 0.0
    %220 = vmatpush.msra.mxu0 0.0
    %221 = vmatpush.msra.mxu0 0.0
    %222 = vmatpush.msra.mxu0 0.0
    %223 = vmatpush.msra.mxu0 0.0
    %224 = vmatpush.msra.mxu0 0.0
    %225 = vmatpush.msra.mxu0 %v204
    %226 = vmatpush.msra.mxu0 %v203
    %227 = vmatpush.msra.mxu0 %v202
    %228 = vmatpush.msra.mxu0 %v201
    %229 = vmatpush.msra.mxu0 %v200
    %230 = vmatpush.msra.mxu0 %v199
    %231 = vmatpush.msra.mxu0 %v198
    %232 = vmatpush.msra.mxu0 %v197
    %233 = vmatmul.f32.gmra.mxu0 %v206
    %v234 = vpop.f32.mrf.mxu0
    %v235 = vadd.f32 0.0, %v234
    %236 = vmatmul.f32.gmra.mxu0 %v209
    %v237 = vpop.f32.mrf.mxu0
    %v238 = vadd.f32 0.0, %v237
    %239 = vmatmul.f32.gmra.mxu0 %v212
    %v240 = vpop.f32.mrf.mxu0
    %v241 = vadd.f32 0.0, %v240
    %242 = vmatmul.f32.gmra.mxu0 %v215
    %v243 = vpop.f32.mrf.mxu0
    %v244 = vadd.f32 0.0, %v243
    %245 = vdwg.mxu0
    %v246 = vmax.f32 %v235, %v238
    %v247 = vmax.f32 %v241, %v244
    %v248 = vmax.f32 %v246, %v247
    %v249 = vsub.f32 %v235, %v248
    %v250 = vmul.f32 %v249, 1.442695
    %v251 = vpow.pop %v250
    %v252 = vsub.f32 %v238, %v248
    %v253 = vmul.f32 %v252, 1.442695
    %v254 = vpow.pop %v253
    %v255 = vsub.f32 %v241, %v248
    %v256 = vmul.f32 %v255, 1.442695
    %v257 = vpow.pop %v256
    %v258 = vsub.f32 %v244, %v248
    %v259 = vmul.f32 %v258, 1.442695
    %v260 = vpow.pop %v259
    %v261 = vadd.f32 %v251, %v254
    %v262 = vadd.f32 %v257, %v260
    %v263 = vadd.f32 %v261, %v262
    %v264 = vrcp.pop %v263
    %v265 = vmul.f32 %v251, %v181
    %v266 = vmul.f32 %v254, %v190
    %v267 = vadd.f32 %v265, %v266
    %v268 = vmul.f32 %v257, %v191
    %v269 = vmul.f32 %v260, %v192
    %v270 = vadd.f32 %v268, %v269
    %v271 = vadd.f32 %v267, %v270
    %v272 = vmul.f32 %v271, %v264
    %v273 = vld [vmem:[%s8] sm:$0xff]
    %v274 = vld [vmem:[%s8 + $0x8] sm:$0xff]
    %v275 = vld [vmem:[%s8 + $0x10] sm:$0xff]
    %v276 = vld [vmem:[%s8 + $0x18] sm:$0xff]
    %v277 = vld [vmem:[%s8 + $0x20] sm:$0xff]
    %v278 = vld [vmem:[%s8 + $0x28] sm:$0xff]
    %v279 = vld [vmem:[%s8 + $0x30] sm:$0xff]
    %v280 = vld [vmem:[%s8 + $0x38] sm:$0xff]
    %v281 = vld [vmem:[%s9] sm:$0x1]
    %v283 = vperm.slane %v281, 0
    %v286 = vsel %vm69, %v272, 0
    %288 = vmatpush.msra.mxu0 0.0
    %289 = vmatpush.msra.mxu0 0.0
    %290 = vmatpush.msra.mxu0 0.0
    %291 = vmatpush.msra.mxu0 0.0
    %292 = vmatpush.msra.mxu0 0.0
    %293 = vmatpush.msra.mxu0 0.0
    %294 = vmatpush.msra.mxu0 0.0
    %295 = vmatpush.msra.mxu0 0.0
    %296 = vmatpush.msra.mxu0 %v280
    %297 = vmatpush.msra.mxu0 %v279
    %298 = vmatpush.msra.mxu0 %v278
    %299 = vmatpush.msra.mxu0 %v277
    %300 = vmatpush.msra.mxu0 %v276
    %301 = vmatpush.msra.mxu0 %v275
    %302 = vmatpush.msra.mxu0 %v274
    %303 = vmatpush.msra.mxu0 %v273
    %304 = vmatmul.f32.gmra.mxu0 %v286
    %v305 = vpop.f32.mrf.mxu0
    %v306 = vadd.f32 %v283, %v305
    %307 = vdwg.mxu0
    %308 = vst [vmem:[#allocation2] sm:$0xff] %v306
    // Predicated region
    $region42: #{joint_attn_forward.1} parent=1 // pred_check
      _
    $region43: #{joint_attn_forward.1} parent=1 // pred_check_branch
      %310 = sbr.rel (0) target = $region45
    $region44: #{joint_attn_forward.1} parent=1 // pred_region
      %312 = vsyncadd [#allocation3], 0
      %s314 = sshll.u32 [#allocation2], 4
      %s315 = int_to_ptr.vmem [resolvable:$true] %s314
      %s316 = sshll.u32 %s10, 4
      %s317 = int_to_ptr.hbm [resolvable:$true] %s316
      %319 = dma.vmem_to_hbm [thread:$0]  %s315, 128, %s317, [#allocation3]
    $region45: #{joint_attn_forward.1} parent=1 // pred_fallthru
      _
    // Predicated region
    $region46: #{joint_attn_forward.1} parent=1 // pred_check
      _
    $region47: #{joint_attn_forward.1} parent=1 // pred_check_branch
      %321 = sbr.rel (0) target = $region49
    $region48: #{joint_attn_forward.1} parent=1 // pred_region
      %323 = dma.done [#allocation3], 128
    $region49: #{joint_attn_forward.1} parent=1 // pred_fallthru
      _
    %324 = vsyncpa [#allocation3], 1

</llo_original>
